<compile_context>
chip_gen: v7x
topology: tpu7x:2x2x1
jax: 0.10.0
libtpu: 0.0.40
codegen_flags: <defaults>
</compile_context>

<pallas_src>
import math

import jax
import jax.numpy as jnp
from jax.experimental import pallas as pl
from jax.experimental.pallas import tpu as pltpu

INVSOFTPLUS = 1.4427
_HALF_LOG_2PI = 0.5 * math.log(2.0 * math.pi)
_LANE = 128


def _cdiv(a, b):
    return -(-a // b)


def _round_up(a, m):
    return _cdiv(a, m) * m


def _sublane(itemsize):
    # sublane packing per dtype width (f32 -> 8, bf16 -> 16, int8/fp8 -> 32)
    return {4: 8, 2: 16, 1: 32}.get(itemsize, 8)


def _vmem_capacity_bytes():
    try:
        return int(pltpu.get_tpu_info().vmem_capacity_bytes)
    except Exception:
        return 64 * 1024 * 1024  # conservative default (v7x per-TC VMEM)


def _choose_tiles(N, Dp, itemsize, max_tile_bytes):
    """Pick (row_block, lane_block) for an (N, Dp) element-wise kernel.

    Goals: lane-dense tiles (td multiple of 128, full width when it fits),
    tiles big enough (>= ~1 MiB) that the ~0.35us per-step overhead is
    amortized, tiles small enough to fit the per-buffer VMEM budget, and
    >= ~8 grid blocks on large problems so both v7x TensorCores stream.
    """
    sub = _sublane(itemsize)
    min_tile_bytes = 1024 * 1024
    target_blocks = 8

    # Lane (D) axis: split into 128-multiples only when even `sub` full-width
    # rows would overflow the per-buffer budget.
    if sub * Dp * itemsize > max_tile_bytes:
        td = max(_LANE, (max_tile_bytes // (sub * itemsize)) // _LANE * _LANE)
        td = min(td, Dp)
    else:
        td = Dp

    # Row (N) axis.
    if N <= sub:
        return N, td  # full-dim row block ((8,128) rule exempt)

    tb_fit = max(sub, (max_tile_bytes // (td * itemsize)) // sub * sub)
    d_blocks = _cdiv(Dp, td)
    row_blocks_wanted = max(1, _cdiv(target_blocks, d_blocks))
    tb_par = _round_up(_cdiv(N, row_blocks_wanted), sub)          # parallelism target
    tb_floor = _round_up(_cdiv(min_tile_bytes, td * itemsize), sub)  # amortize overhead
    tb = min(tb_fit, max(tb_par, tb_floor))
    tb = max(sub, min(tb, _round_up(N, sub)))
    return tb, td


def _gm_kernel(x_ref, loc_ref, inv_ref, bias_ref, o_ref):
    # x_ref: (TB, TD) input tile; loc/inv/bias: (1, TD) f32 parameter rows.
    xf = x_ref[...].astype(jnp.float32)
    d = (xf - loc_ref[...]) * inv_ref[...]
    o_ref[...] = (bias_ref[...] - 0.5 * (d * d)).astype(o_ref.dtype)


def gaussian_mixture_log_prob(x_nchw, weight, loc, scale):
    """x_nchw: (N,C,H,W); weight: (1,C,1,1); loc, scale: (C,1,1)."""
    N, C, H, W = x_nchw.shape
    HW = H * W
    D = C * HW
    x2 = x_nchw.reshape(N, D)

    # ---- hoisted per-channel math (plain XLA, f32, runs once) --------------
    scale_c = scale.reshape(C).astype(jnp.float32)
    weight_c = weight.reshape(C).astype(jnp.float32)
    loc_c = loc.reshape(C).astype(jnp.float32)

    s = INVSOFTPLUS * jax.nn.softplus(scale_c)                    # (C,)
    inv_s = 1.0 / s                                               # (C,)
    bias = -jax.nn.softplus(weight_c) - jnp.log(s) - _HALF_LOG_2PI  # (C,)

    def _row(v):  # per-channel value broadcast to a lane-dense (1, D) f32 row
        return jnp.broadcast_to(v[:, None], (C, HW)).reshape(1, D)

    # ---- lane padding so the last dim is a multiple of 128 -----------------
    Dp = _round_up(D, _LANE)
    pad = Dp - D

    def _pad_cols(a):
        return a if pad == 0 else jnp.pad(a, ((0, 0), (0, pad)))

    x2p = _pad_cols(x2)
    loc_row = _pad_cols(_row(loc_c))
    inv_row = _pad_cols(_row(inv_s))
    bias_row = _pad_cols(_row(bias))

    # ---- generation-aware tiling & VMEM budget ------------------------------
    itemsize = x2p.dtype.itemsize
    vmem_cap = _vmem_capacity_bytes()                 # 128 MiB v5e/v6e, 64 MiB v7x
    max_tile_bytes = max(512 * 1024, vmem_cap // 12)  # ~10.7 MiB / ~5.3 MiB per buffer
    vmem_limit = vmem_cap // 2                        # 64 MiB / 32 MiB scoped limit

    tb, td = _choose_tiles(N, Dp, itemsize, max_tile_bytes)
    n_db = _cdiv(Dp, td)
    n_rb = _cdiv(N, tb)

    # Grid: D-blocks outer, row-blocks inner -> parameter rows (which depend
    # only on the D-block) stay resident across the inner loop.
    def _call(single_buffer_params):
        if single_buffer_params:
            p_spec = pl.BlockSpec((1, td), lambda j, i: (0, j),
                                  pipeline_mode=pl.Buffered(1))
        else:
            p_spec = pl.BlockSpec((1, td), lambda j, i: (0, j))
        return pl.pallas_call(
            _gm_kernel,
            out_shape=jax.ShapeDtypeStruct((N, Dp), x2p.dtype),
            grid=(n_db, n_rb),
            in_specs=[
                pl.BlockSpec((tb, td), lambda j, i: (i, j)),  # x
                p_spec,                                       # loc
                p_spec,                                       # inv_scale
                p_spec,                                       # bias
            ],
            out_specs=pl.BlockSpec((tb, td), lambda j, i: (i, j)),
            compiler_params=pltpu.CompilerParams(
                dimension_semantics=("parallel", "parallel"),
                vmem_limit_bytes=vmem_limit,
            ),
        )(x2p, loc_row, inv_row, bias_row)

    # Prefer single-buffered parameter rows (saves 3*td*4 bytes of VMEM per
    # extra buffer); fall back to default double buffering if unsupported.
    try:
        out = _call(True)
    except Exception:
        out = _call(False)

    # NOTE: if the caller can donate x, input_output_aliases={0: 0} would let
    # the result overwrite x2p in place (same dtype/shape) and save one HBM
    # allocation; not assumed here.

    if pad:
        out = out[:, :D]
    return out.reshape(N, C, H, W)


def _reference(x_nchw, weight, loc, scale):
    s = INVSOFTPLUS * jax.nn.softplus(scale)          # (C,1,1)
    logw = -jax.nn.softplus(weight)                   # (1,C,1,1)
    var = s * s
    logp = -((x_nchw - loc) ** 2) / (2.0 * var) - jnp.log(s) - _HALF_LOG_2PI
    return logw + logp


if __name__ == "__main__":
    key = jax.random.PRNGKey(0)
    k_x, k_w, k_loc, k_s = jax.random.split(key, 4)

    N, C, H, W = 2, 4, 16, 16
    x = jax.random.normal(k_x, (N, C, H, W), dtype=jnp.float32)

    # deterministic synthetic parameters (module __init__ uses zeros; small
    # random values exercise the broadcasting / hoisted math)
    weight = 0.1 * jax.random.normal(k_w, (1, C, 1, 1), dtype=jnp.float32)
    loc = 0.1 * jax.random.normal(k_loc, (C, 1, 1), dtype=jnp.float32)
    scale = 0.1 * jax.random.normal(k_s, (C, 1, 1), dtype=jnp.float32)

    out = gaussian_mixture_log_prob(x, weight, loc, scale)
    out = jax.block_until_ready(out)

    ref = _reference(x, weight, loc, scale)
    assert out.shape == (N, C, H, W)
    assert jnp.allclose(out, ref, atol=1e-5, rtol=1e-5)

    print("KERNEL_OK")
</pallas_src>

<mosaic_0001>
module attributes {stable_mosaic.version = 11 : i64} {
  func.func @_gm_kernel(%arg0: i32, %arg1: i32, %arg2: memref<2x1024xf32, #tpu.memory_space<vmem>>, %arg3: memref<1x1024xf32, #tpu.memory_space<vmem>>, %arg4: memref<1x1024xf32, #tpu.memory_space<vmem>>, %arg5: memref<1x1024xf32, #tpu.memory_space<vmem>>, %arg6: memref<2x1024xf32, #tpu.memory_space<vmem>>) attributes {dimension_semantics = [#tpu.dimension_semantics<parallel>, #tpu.dimension_semantics<parallel>], iteration_bounds = array<i64: 1, 1>, scalar_prefetch = 0 : i64, scratch_operands = 0 : i64, tpu.core_type = #tpu.core_type<tc>, window_params = [{transform_indices = @transform_0, window_bounds = array<i64: 2, 1024>}, {pipeline_mode = #tpu.pipeline_mode<synchronous>, transform_indices = @transform_1, window_bounds = array<i64: 1, 1024>}, {pipeline_mode = #tpu.pipeline_mode<synchronous>, transform_indices = @transform_2, window_bounds = array<i64: 1, 1024>}, {pipeline_mode = #tpu.pipeline_mode<synchronous>, transform_indices = @transform_3, window_bounds = array<i64: 1, 1024>}, {transform_indices = @transform_4, window_bounds = array<i64: 2, 1024>}]} {
    %c0 = arith.constant 0 : index
    %c0_0 = arith.constant 0 : index
    %0 = vector.load %arg2[%c0, %c0_0] : memref<2x1024xf32, #tpu.memory_space<vmem>>, vector<2x1024xf32>
    %c0_1 = arith.constant 0 : index
    %c0_2 = arith.constant 0 : index
    %1 = vector.load %arg3[%c0_1, %c0_2] : memref<1x1024xf32, #tpu.memory_space<vmem>>, vector<1x1024xf32>
    %2 = vector.broadcast %1 : vector<1x1024xf32> to vector<2x1024xf32>
    %3 = arith.subf %0, %2 : vector<2x1024xf32>
    %c0_3 = arith.constant 0 : index
    %c0_4 = arith.constant 0 : index
    %4 = vector.load %arg4[%c0_3, %c0_4] : memref<1x1024xf32, #tpu.memory_space<vmem>>, vector<1x1024xf32>
    %5 = vector.broadcast %4 : vector<1x1024xf32> to vector<2x1024xf32>
    %6 = arith.mulf %3, %5 : vector<2x1024xf32>
    %c0_5 = arith.constant 0 : index
    %c0_6 = arith.constant 0 : index
    %7 = vector.load %arg5[%c0_5, %c0_6] : memref<1x1024xf32, #tpu.memory_space<vmem>>, vector<1x1024xf32>
    %8 = arith.mulf %6, %6 : vector<2x1024xf32>
    %cst = arith.constant 5.000000e-01 : f32
    %9 = vector.broadcast %cst : f32 to vector<2x1024xf32>
    %10 = arith.mulf %9, %8 : vector<2x1024xf32>
    %11 = vector.broadcast %7 : vector<1x1024xf32> to vector<2x1024xf32>
    %12 = arith.subf %11, %10 : vector<2x1024xf32>
    %c0_7 = arith.constant 0 : index
    %c0_8 = arith.constant 0 : index
    %13 = vector.load %arg6[%c0_7, %c0_8] : memref<2x1024xf32, #tpu.memory_space<vmem>>, vector<2x1024xf32>
    tpu.vector_store %arg6[%c0_7, %c0_8], %12 {strides = array<i32>} : memref<2x1024xf32, #tpu.memory_space<vmem>>, vector<2x1024xf32>,
    return
  }
  func.func @transform_0(%arg0: i32, %arg1: i32) -> (i32, i32) {
    %c0_i32 = arith.constant 0 : i32
    return %arg1, %arg0 : i32, i32
  }
  func.func @transform_1(%arg0: i32, %arg1: i32) -> (i32, i32) {
    %c0_i32 = arith.constant 0 : i32
    %c0_i32_0 = arith.constant 0 : i32
    return %c0_i32, %arg0 : i32, i32
  }
  func.func @transform_2(%arg0: i32, %arg1: i32) -> (i32, i32) {
    %c0_i32 = arith.constant 0 : i32
    %c0_i32_0 = arith.constant 0 : i32
    return %c0_i32, %arg0 : i32, i32
  }
  func.func @transform_3(%arg0: i32, %arg1: i32) -> (i32, i32) {
    %c0_i32 = arith.constant 0 : i32
    %c0_i32_0 = arith.constant 0 : i32
    return %c0_i32, %arg0 : i32, i32
  }
  func.func @transform_4(%arg0: i32, %arg1: i32) -> (i32, i32) {
    %c0_i32 = arith.constant 0 : i32
    return %arg1, %arg0 : i32, i32
  }
}

module attributes {stable_mosaic.version = 11 : i64} {
  func.func @_gm_kernel(%arg0: i32, %arg1: i32, %arg2: memref<2x1024xf32, #tpu.memory_space<vmem>>, %arg3: memref<1x1024xf32, #tpu.memory_space<vmem>>, %arg4: memref<1x1024xf32, #tpu.memory_space<vmem>>, %arg5: memref<1x1024xf32, #tpu.memory_space<vmem>>, %arg6: memref<2x1024xf32, #tpu.memory_space<vmem>>) attributes {dimension_semantics = [#tpu.dimension_semantics<parallel>, #tpu.dimension_semantics<parallel>], iteration_bounds = array<i64: 1, 1>, scalar_prefetch = 0 : i64, scratch_operands = 0 : i64, tpu.core_type = #tpu.core_type<tc>, window_params = [{transform_indices = @transform_0, window_bounds = array<i64: 2, 1024>}, {transform_indices = @transform_1, window_bounds = array<i64: 1, 1024>}, {transform_indices = @transform_2, window_bounds = array<i64: 1, 1024>}, {transform_indices = @transform_3, window_bounds = array<i64: 1, 1024>}, {transform_indices = @transform_4, window_bounds = array<i64: 2, 1024>}]} {
    %c0 = arith.constant 0 : index
    %c0_0 = arith.constant 0 : index
    %0 = vector.load %arg2[%c0, %c0_0] : memref<2x1024xf32, #tpu.memory_space<vmem>>, vector<2x1024xf32>
    %c0_1 = arith.constant 0 : index
    %c0_2 = arith.constant 0 : index
    %1 = vector.load %arg3[%c0_1, %c0_2] : memref<1x1024xf32, #tpu.memory_space<vmem>>, vector<1x1024xf32>
    %2 = vector.broadcast %1 : vector<1x1024xf32> to vector<2x1024xf32>
    %3 = arith.subf %0, %2 : vector<2x1024xf32>
    %c0_3 = arith.constant 0 : index
    %c0_4 = arith.constant 0 : index
    %4 = vector.load %arg4[%c0_3, %c0_4] : memref<1x1024xf32, #tpu.memory_space<vmem>>, vector<1x1024xf32>
    %5 = vector.broadcast %4 : vector<1x1024xf32> to vector<2x1024xf32>
    %6 = arith.mulf %3, %5 : vector<2x1024xf32>
    %c0_5 = arith.constant 0 : index
    %c0_6 = arith.constant 0 : index
    %7 = vector.load %arg5[%c0_5, %c0_6] : memref<1x1024xf32, #tpu.memory_space<vmem>>, vector<1x1024xf32>
    %8 = arith.mulf %6, %6 : vector<2x1024xf32>
    %cst = arith.constant 5.000000e-01 : f32
    %9 = vector.broadcast %cst : f32 to vector<2x1024xf32>
    %10 = arith.mulf %9, %8 : vector<2x1024xf32>
    %11 = vector.broadcast %7 : vector<1x1024xf32> to vector<2x1024xf32>
    %12 = arith.subf %11, %10 : vector<2x1024xf32>
    %c0_7 = arith.constant 0 : index
    %c0_8 = arith.constant 0 : index
    %13 = vector.load %arg6[%c0_7, %c0_8] : memref<2x1024xf32, #tpu.memory_space<vmem>>, vector<2x1024xf32>
    tpu.vector_store %arg6[%c0_7, %c0_8], %12 {strides = array<i32>} : memref<2x1024xf32, #tpu.memory_space<vmem>>, vector<2x1024xf32>,
    return
  }
  func.func @transform_0(%arg0: i32, %arg1: i32) -> (i32, i32) {
    %c0_i32 = arith.constant 0 : i32
    return %arg1, %arg0 : i32, i32
  }
  func.func @transform_1(%arg0: i32, %arg1: i32) -> (i32, i32) {
    %c0_i32 = arith.constant 0 : i32
    %c0_i32_0 = arith.constant 0 : i32
    return %c0_i32, %arg0 : i32, i32
  }
  func.func @transform_2(%arg0: i32, %arg1: i32) -> (i32, i32) {
    %c0_i32 = arith.constant 0 : i32
    %c0_i32_0 = arith.constant 0 : i32
    return %c0_i32, %arg0 : i32, i32
  }
  func.func @transform_3(%arg0: i32, %arg1: i32) -> (i32, i32) {
    %c0_i32 = arith.constant 0 : i32
    %c0_i32_0 = arith.constant 0 : i32
    return %c0_i32, %arg0 : i32, i32
  }
  func.func @transform_4(%arg0: i32, %arg1: i32) -> (i32, i32) {
    %c0_i32 = arith.constant 0 : i32
    return %arg1, %arg0 : i32, i32
  }
}

</mosaic_0001>

<llo_original>
// kernel: tpu_custom_call.1
$region0: #{tpu_custom_call.1}
  #allocation0 [shape = 'u32[]', space=smem, size = 0x4, offset = 0x4, fixed_abs, tag = 'smem constant byte address 0x4 - core index']
  #allocation1 [shape = 'u32[144,128]{1,0:T(1,128)}', space=vmem, size = 0x12000, scoped, tag = 'internal scratch']
  %s0 = inlined_call_operand.hbm [shape: f32[2,1024], index: 0, kind: input, shape index: {}]
  %s1 = inlined_call_operand.hbm [shape: f32[1,1024], index: 1, kind: input, shape index: {}]
  %s2 = inlined_call_operand.hbm [shape: f32[1,1024], index: 2, kind: input, shape index: {}]
  %s3 = inlined_call_operand.vmem [shape: f32[1,1024], index: 3, kind: input, shape index: {}]
  %s4 = inlined_call_operand.hbm [shape: f32[2,1024], index: 4, kind: output, shape index: {}]
  %s5 = sld [smem:[#allocation0]]
  $region38: #{tpu_custom_call.1} parent=0
    _
  %s7 = ssub.s32 1, %s5
  %s8 = scalar_select 0, %s7, %s5
  $region1: #{tpu_custom_call.1} parent=0
    #allocation2 [shape = 'u8[8192]{0}', space=vmem, size = 0x2000, scoped, tag = 'input window, operand 0, single buffered']
    #allocation3 [shape = 's32[1]{0}', space=sflag, size = 0x4, scoped, tag = 'scoped memory for tpu_custom_call.1']
    #allocation4 [shape = 's32[1]{0}', space=sflag, size = 0x4, scoped, tag = 'scoped memory for tpu_custom_call.1']
    #allocation5 [shape = 'u8[4096]{0}', space=vmem, size = 0x1000, scoped, tag = 'input window, operand 1, single buffered']
    #allocation6 [shape = 's32[1]{0}', space=sflag, size = 0x4, scoped, tag = 'scoped memory for tpu_custom_call.1']
    #allocation7 [shape = 'u8[4096]{0}', space=vmem, size = 0x1000, scoped, tag = 'input window, operand 2, single buffered']
    #allocation8 [shape = 'u8[8192]{0}', space=vmem, size = 0x2000, scoped, tag = 'output window, operand 0, single buffered']
    %9 = vsyncpa [#allocation3], 0
    %10 = vsyncpa [#allocation6], 0
    %11 = vsyncpa [#allocation4], 0
    // Predicated region
    $region2: #{tpu_custom_call.1} parent=1 // pred_check
      _
    $region3: #{tpu_custom_call.1} parent=1 // pred_check_branch
      %13 = sbr.rel (0) target = $region5
    $region4: #{tpu_custom_call.1} parent=1 // pred_region
      %s15 = ssub.s32 256, 256
      %16 = vsyncadd [#allocation3], %s15
      %s18 = sshll.u32 [#allocation2], 4
      %s19 = int_to_ptr.vmem [resolvable:$true] %s18
      %21 = dma.hbm_to_vmem [thread:$0]  %s0, 256, %s19, [#allocation3]
    $region5: #{tpu_custom_call.1} parent=1 // pred_fallthru
      _
    // Predicated region
    $region6: #{tpu_custom_call.1} parent=1 // pred_check
      _
    $region7: #{tpu_custom_call.1} parent=1 // pred_check_branch
      %23 = sbr.rel (0) target = $region9
    $region8: #{tpu_custom_call.1} parent=1 // pred_region
      %s25 = ssub.s32 128, 128
      %26 = vsyncadd [#allocation6], %s25
      %s28 = sshll.u32 [#allocation5], 4
      %s29 = int_to_ptr.vmem [resolvable:$true] %s28
      %31 = dma.hbm_to_vmem [thread:$0]  %s1, 128, %s29, [#allocation6]
    $region9: #{tpu_custom_call.1} parent=1 // pred_fallthru
      _
    // Predicated region
    $region10: #{tpu_custom_call.1} parent=1 // pred_check
      _
    $region11: #{tpu_custom_call.1} parent=1 // pred_check_branch
      %33 = sbr.rel (0) target = $region13
    $region12: #{tpu_custom_call.1} parent=1 // pred_region
      %s35 = ssub.s32 128, 128
      %36 = vsyncadd [#allocation6], %s35
      %s38 = sshll.u32 [#allocation7], 4
      %s39 = int_to_ptr.vmem [resolvable:$true] %s38
      %41 = dma.hbm_to_vmem [thread:$0]  %s2, 128, %s39, [#allocation6]
    $region13: #{tpu_custom_call.1} parent=1 // pred_fallthru
      _
    // Predicated region
    $region14: #{tpu_custom_call.1} parent=1 // pred_check
      _
    $region15: #{tpu_custom_call.1} parent=1 // pred_check_branch
      %43 = sbr.rel (0) target = $region17
    $region16: #{tpu_custom_call.1} parent=1 // pred_region
      _
    $region17: #{tpu_custom_call.1} parent=1 // pred_fallthru
      _
    // Predicated region
    $region18: #{tpu_custom_call.1} parent=1 // pred_check
      _
    $region19: #{tpu_custom_call.1} parent=1 // pred_check_branch
      %45 = sbr.rel (0) target = $region21
    $region20: #{tpu_custom_call.1} parent=1 // pred_region
      %46 = dma.done [#allocation3], 256
    $region21: #{tpu_custom_call.1} parent=1 // pred_fallthru
      _
    // Predicated region
    $region22: #{tpu_custom_call.1} parent=1 // pred_check
      _
    $region23: #{tpu_custom_call.1} parent=1 // pred_check_branch
      %48 = sbr.rel (0) target = $region25
    $region24: #{tpu_custom_call.1} parent=1 // pred_region
      %49 = dma.done [#allocation6], 128
    $region25: #{tpu_custom_call.1} parent=1 // pred_fallthru
      _
    // Predicated region
    $region26: #{tpu_custom_call.1} parent=1 // pred_check
      _
    $region27: #{tpu_custom_call.1} parent=1 // pred_check_branch
      %51 = sbr.rel (0) target = $region29
    $region28: #{tpu_custom_call.1} parent=1 // pred_region
      %52 = dma.done [#allocation6], 128
    $region29: #{tpu_custom_call.1} parent=1 // pred_fallthru
      _
    %v53 = vld [vmem:[#allocation2] sm:$0xff]
    %v54 = vld [vmem:[#allocation2 + $0x8] sm:$0xff]
    %v55 = vld [vmem:[#allocation5] sm:$0xff]
    %v57 = vlaneseq
    %v58 = vshrl.u32 %v57, 7
    %v59 = vsub.s32 0, %v58
    %v60 = vrot.slane %v55, %v59
    %v61 = vlaneseq
    %v62 = vshrl.u32 %v61, 7
    %v63 = vsub.s32 1, %v62
    %v64 = vrot.slane %v55, %v63
    %v65 = vlaneseq
    %v66 = vshrl.u32 %v65, 7
    %v67 = vsub.s32 2, %v66
    %v68 = vrot.slane %v55, %v67
    %v69 = vlaneseq
    %v70 = vshrl.u32 %v69, 7
    %v71 = vsub.s32 3, %v70
    %v72 = vrot.slane %v55, %v71
    %v73 = vlaneseq
    %v74 = vshrl.u32 %v73, 7
    %v75 = vsub.s32 4, %v74
    %v76 = vrot.slane %v55, %v75
    %v77 = vlaneseq
    %v78 = vshrl.u32 %v77, 7
    %v79 = vsub.s32 5, %v78
    %v80 = vrot.slane %v55, %v79
    %v81 = vlaneseq
    %v82 = vshrl.u32 %v81, 7
    %v83 = vsub.s32 6, %v82
    %v84 = vrot.slane %v55, %v83
    %v85 = vlaneseq
    %v86 = vshrl.u32 %v85, 7
    %v87 = vsub.s32 7, %v86
    %v88 = vrot.slane %v55, %v87
    %v89 = vcombine.low %v60, %v64
    %v90 = vcombine.low %v68, %v72
    %v92 = vunpack.c.l.s4 1983009808
    %v93 = vunpack.c.0.s8 %v92
    %v94 = vlaneseq
    %v95 = vshrl.u32 %v94, 7
    %v96 = vsub.s32 %v93, %v95
    %v97 = vrot.slane %v89, %v96
    %v99 = vunpack.c.l.s4 1983009808
    %v100 = vunpack.c.0.s8 %v99
    %v101 = vlaneseq
    %v102 = vshrl.u32 %v101, 7
    %v103 = vsub.s32 %v100, %v102
    %v104 = vrot.slane %v90, %v103
    %v105 = vcombine.low %v97, %v104
    %v106 = vcombine.low %v76, %v80
    %v107 = vcombine.low %v84, %v88
    %v109 = vunpack.c.l.s4 1983009808
    %v110 = vunpack.c.0.s8 %v109
    %v111 = vlaneseq
    %v112 = vshrl.u32 %v111, 7
    %v113 = vsub.s32 %v110, %v112
    %v114 = vrot.slane %v106, %v113
    %v116 = vunpack.c.l.s4 1983009808
    %v117 = vunpack.c.0.s8 %v116
    %v118 = vlaneseq
    %v119 = vshrl.u32 %v118, 7
    %v120 = vsub.s32 %v117, %v119
    %v121 = vrot.slane %v107, %v120
    %v122 = vcombine.low %v114, %v121
    %v125 = vsub.f32 %v53, %v105
    %v126 = vsub.f32 %v54, %v122
    %v127 = vld [vmem:[#allocation7] sm:$0xff]
    %v129 = vlaneseq
    %v130 = vshrl.u32 %v129, 7
    %v131 = vsub.s32 0, %v130
    %v132 = vrot.slane %v127, %v131
    %v133 = vlaneseq
    %v134 = vshrl.u32 %v133, 7
    %v135 = vsub.s32 1, %v134
    %v136 = vrot.slane %v127, %v135
    %v137 = vlaneseq
    %v138 = vshrl.u32 %v137, 7
    %v139 = vsub.s32 2, %v138
    %v140 = vrot.slane %v127, %v139
    %v141 = vlaneseq
    %v142 = vshrl.u32 %v141, 7
    %v143 = vsub.s32 3, %v142
    %v144 = vrot.slane %v127, %v143
    %v145 = vlaneseq
    %v146 = vshrl.u32 %v145, 7
    %v147 = vsub.s32 4, %v146
    %v148 = vrot.slane %v127, %v147
    %v149 = vlaneseq
    %v150 = vshrl.u32 %v149, 7
    %v151 = vsub.s32 5, %v150
    %v152 = vrot.slane %v127, %v151
    %v153 = vlaneseq
    %v154 = vshrl.u32 %v153, 7
    %v155 = vsub.s32 6, %v154
    %v156 = vrot.slane %v127, %v155
    %v157 = vlaneseq
    %v158 = vshrl.u32 %v157, 7
    %v159 = vsub.s32 7, %v158
    %v160 = vrot.slane %v127, %v159
    %v161 = vcombine.low %v132, %v136
    %v162 = vcombine.low %v140, %v144
    %v164 = vunpack.c.l.s4 1983009808
    %v165 = vunpack.c.0.s8 %v164
    %v166 = vlaneseq
    %v167 = vshrl.u32 %v166, 7
    %v168 = vsub.s32 %v165, %v167
    %v169 = vrot.slane %v161, %v168
    %v171 = vunpack.c.l.s4 1983009808
    %v172 = vunpack.c.0.s8 %v171
    %v173 = vlaneseq
    %v174 = vshrl.u32 %v173, 7
    %v175 = vsub.s32 %v172, %v174
    %v176 = vrot.slane %v162, %v175
    %v177 = vcombine.low %v169, %v176
    %v178 = vcombine.low %v148, %v152
    %v179 = vcombine.low %v156, %v160
    %v181 = vunpack.c.l.s4 1983009808
    %v182 = vunpack.c.0.s8 %v181
    %v183 = vlaneseq
    %v184 = vshrl.u32 %v183, 7
    %v185 = vsub.s32 %v182, %v184
    %v186 = vrot.slane %v178, %v185
    %v188 = vunpack.c.l.s4 1983009808
    %v189 = vunpack.c.0.s8 %v188
    %v190 = vlaneseq
    %v191 = vshrl.u32 %v190, 7
    %v192 = vsub.s32 %v189, %v191
    %v193 = vrot.slane %v179, %v192
    %v194 = vcombine.low %v186, %v193
    %v197 = vmul.f32 %v125, %v177
    %v198 = vmul.f32 %v126, %v194
    %v199 = vld [vmem:[%s3] sm:$0xff]
    %v200 = vmul.f32 %v197, %v197
    %v201 = vmul.f32 %v198, %v198
    %v202 = vmul.f32 %v200, 0.5
    %v203 = vmul.f32 %v201, 0.5
    %v205 = vlaneseq
    %v206 = vshrl.u32 %v205, 7
    %v207 = vsub.s32 0, %v206
    %v208 = vrot.slane %v199, %v207
    %v209 = vlaneseq
    %v210 = vshrl.u32 %v209, 7
    %v211 = vsub.s32 1, %v210
    %v212 = vrot.slane %v199, %v211
    %v213 = vlaneseq
    %v214 = vshrl.u32 %v213, 7
    %v215 = vsub.s32 2, %v214
    %v216 = vrot.slane %v199, %v215
    %v217 = vlaneseq
    %v218 = vshrl.u32 %v217, 7
    %v219 = vsub.s32 3, %v218
    %v220 = vrot.slane %v199, %v219
    %v221 = vlaneseq
    %v222 = vshrl.u32 %v221, 7
    %v223 = vsub.s32 4, %v222
    %v224 = vrot.slane %v199, %v223
    %v225 = vlaneseq
    %v226 = vshrl.u32 %v225, 7
    %v227 = vsub.s32 5, %v226
    %v228 = vrot.slane %v199, %v227
    %v229 = vlaneseq
    %v230 = vshrl.u32 %v229, 7
    %v231 = vsub.s32 6, %v230
    %v232 = vrot.slane %v199, %v231
    %v233 = vlaneseq
    %v234 = vshrl.u32 %v233, 7
    %v235 = vsub.s32 7, %v234
    %v236 = vrot.slane %v199, %v235
    %v247 = vcombine.high %v202, %v202
    %v249 = vunpack.c.l.s4 1983009808
    %v250 = vunpack.c.0.s8 %v249
    %v251 = vlaneseq
    %v252 = vshrl.u32 %v251, 7
    %v253 = vsub.s32 %v250, %v252
    %v254 = vrot.slane %v202, %v253
    %v256 = vunpack.c.l.s4 1983009808
    %v257 = vunpack.c.0.s8 %v256
    %v258 = vlaneseq
    %v259 = vshrl.u32 %v258, 7
    %v260 = vsub.s32 %v257, %v259
    %v261 = vrot.slane %v247, %v260
    %v262 = vcombine.high %v254, %v254
    %v263 = vcombine.high %v261, %v261
    %v264 = vcombine.high %v203, %v203
    %v266 = vunpack.c.l.s4 1983009808
    %v267 = vunpack.c.0.s8 %v266
    %v268 = vlaneseq
    %v269 = vshrl.u32 %v268, 7
    %v270 = vsub.s32 %v267, %v269
    %v271 = vrot.slane %v203, %v270
    %v273 = vunpack.c.l.s4 1983009808
    %v274 = vunpack.c.0.s8 %v273
    %v275 = vlaneseq
    %v276 = vshrl.u32 %v275, 7
    %v277 = vsub.s32 %v274, %v276
    %v278 = vrot.slane %v264, %v277
    %v279 = vcombine.high %v271, %v271
    %v280 = vcombine.high %v278, %v278
    %v289 = vsub.f32 %v208, %v254
    %v290 = vsub.f32 %v212, %v262
    %v291 = vsub.f32 %v216, %v261
    %v292 = vsub.f32 %v220, %v263
    %v293 = vsub.f32 %v224, %v271
    %v294 = vsub.f32 %v228, %v279
    %v295 = vsub.f32 %v232, %v278
    %v296 = vsub.f32 %v236, %v280
    %v305 = vcombine.low %v289, %v290
    %v306 = vcombine.low %v291, %v292
    %v308 = vunpack.c.l.s4 1983009808
    %v309 = vunpack.c.0.s8 %v308
    %v310 = vlaneseq
    %v311 = vshrl.u32 %v310, 7
    %v312 = vsub.s32 %v309, %v311
    %v313 = vrot.slane %v305, %v312
    %v315 = vunpack.c.l.s4 1983009808
    %v316 = vunpack.c.0.s8 %v315
    %v317 = vlaneseq
    %v318 = vshrl.u32 %v317, 7
    %v319 = vsub.s32 %v316, %v318
    %v320 = vrot.slane %v306, %v319
    %v321 = vcombine.low %v313, %v320
    %v322 = vcombine.low %v293, %v294
    %v323 = vcombine.low %v295, %v296
    %v325 = vunpack.c.l.s4 1983009808
    %v326 = vunpack.c.0.s8 %v325
    %v327 = vlaneseq
    %v328 = vshrl.u32 %v327, 7
    %v329 = vsub.s32 %v326, %v328
    %v330 = vrot.slane %v322, %v329
    %v332 = vunpack.c.l.s4 1983009808
    %v333 = vunpack.c.0.s8 %v332
    %v334 = vlaneseq
    %v335 = vshrl.u32 %v334, 7
    %v336 = vsub.s32 %v333, %v335
    %v337 = vrot.slane %v323, %v336
    %v338 = vcombine.low %v330, %v337
    %341 = vst [vmem:[#allocation8] sm:$0xff] %v321
    %342 = vst [vmem:[#allocation8 + $0x8] sm:$0xff] %v338
    // Predicated region
    $region30: #{tpu_custom_call.1} parent=1 // pred_check
      _
    $region31: #{tpu_custom_call.1} parent=1 // pred_check_branch
      %344 = sbr.rel (0) target = $region33
    $region32: #{tpu_custom_call.1} parent=1 // pred_region
      %s346 = ssub.s32 256, 256
      %347 = vsyncadd [#allocation4], %s346
      %s349 = sshll.u32 [#allocation8], 4
      %s350 = int_to_ptr.vmem [resolvable:$true] %s349
      %352 = dma.vmem_to_hbm [thread:$0]  %s350, 256, %s4, [#allocation4]
    $region33: #{tpu_custom_call.1} parent=1 // pred_fallthru
      _
    // Predicated region
    $region34: #{tpu_custom_call.1} parent=1 // pred_check
      _
    $region35: #{tpu_custom_call.1} parent=1 // pred_check_branch
      %354 = sbr.rel (0) target = $region37
    $region36: #{tpu_custom_call.1} parent=1 // pred_region
      %355 = dma.done [#allocation4], 256
    $region37: #{tpu_custom_call.1} parent=1 // pred_fallthru
      _
    %356 = vsyncpa [#allocation3], 1
    %357 = vsyncpa [#allocation6], 1
    %358 = vsyncpa [#allocation4], 1

// kernel: tpu_custom_call.1
$region0: #{tpu_custom_call.1}
  #allocation0 [shape = 'u32[]', space=smem, size = 0x4, offset = 0x4, fixed_abs, tag = 'smem constant byte address 0x4 - core index']
  #allocation1 [shape = 'u32[144,128]{1,0:T(1,128)}', space=vmem, size = 0x12000, scoped, tag = 'internal scratch']
  %s0 = inlined_call_operand.hbm [shape: f32[2,1024], index: 0, kind: input, shape index: {}]
  %s1 = inlined_call_operand.hbm [shape: f32[1,1024], index: 1, kind: input, shape index: {}]
  %s2 = inlined_call_operand.hbm [shape: f32[1,1024], index: 2, kind: input, shape index: {}]
  %s3 = inlined_call_operand.vmem [shape: f32[1,1024], index: 3, kind: input, shape index: {}]
  %s4 = inlined_call_operand.hbm [shape: f32[2,1024], index: 4, kind: output, shape index: {}]
  %s5 = sld [smem:[#allocation0]]
  $region38: #{tpu_custom_call.1} parent=0
    _
  %s7 = ssub.s32 1, %s5
  %s8 = scalar_select 0, %s7, %s5
  $region1: #{tpu_custom_call.1} parent=0
    #allocation2 [shape = 'u8[8192]{0}', space=vmem, size = 0x2000, scoped, tag = 'input window, operand 0, single buffered']
    #allocation3 [shape = 's32[1]{0}', space=sflag, size = 0x4, scoped, tag = 'scoped memory for tpu_custom_call.1']
    #allocation4 [shape = 's32[1]{0}', space=sflag, size = 0x4, scoped, tag = 'scoped memory for tpu_custom_call.1']
    #allocation5 [shape = 'u8[4096]{0}', space=vmem, size = 0x1000, scoped, tag = 'input window, operand 1, single buffered']
    #allocation6 [shape = 's32[1]{0}', space=sflag, size = 0x4, scoped, tag = 'scoped memory for tpu_custom_call.1']
    #allocation7 [shape = 'u8[4096]{0}', space=vmem, size = 0x1000, scoped, tag = 'input window, operand 2, single buffered']
    #allocation8 [shape = 'u8[8192]{0}', space=vmem, size = 0x2000, scoped, tag = 'output window, operand 0, single buffered']
    %9 = vsyncpa [#allocation3], 0
    %10 = vsyncpa [#allocation6], 0
    %11 = vsyncpa [#allocation4], 0
    // Predicated region
    $region2: #{tpu_custom_call.1} parent=1 // pred_check
      _
    $region3: #{tpu_custom_call.1} parent=1 // pred_check_branch
      %13 = sbr.rel (0) target = $region5
    $region4: #{tpu_custom_call.1} parent=1 // pred_region
      %s15 = ssub.s32 256, 256
      %16 = vsyncadd [#allocation3], %s15
      %s18 = sshll.u32 [#allocation2], 4
      %s19 = int_to_ptr.vmem [resolvable:$true] %s18
      %21 = dma.hbm_to_vmem [thread:$0]  %s0, 256, %s19, [#allocation3]
    $region5: #{tpu_custom_call.1} parent=1 // pred_fallthru
      _
    // Predicated region
    $region6: #{tpu_custom_call.1} parent=1 // pred_check
      _
    $region7: #{tpu_custom_call.1} parent=1 // pred_check_branch
      %23 = sbr.rel (0) target = $region9
    $region8: #{tpu_custom_call.1} parent=1 // pred_region
      %s25 = ssub.s32 128, 128
      %26 = vsyncadd [#allocation6], %s25
      %s28 = sshll.u32 [#allocation5], 4
      %s29 = int_to_ptr.vmem [resolvable:$true] %s28
      %31 = dma.hbm_to_vmem [thread:$0]  %s1, 128, %s29, [#allocation6]
    $region9: #{tpu_custom_call.1} parent=1 // pred_fallthru
      _
    // Predicated region
    $region10: #{tpu_custom_call.1} parent=1 // pred_check
      _
    $region11: #{tpu_custom_call.1} parent=1 // pred_check_branch
      %33 = sbr.rel (0) target = $region13
    $region12: #{tpu_custom_call.1} parent=1 // pred_region
      %s35 = ssub.s32 128, 128
      %36 = vsyncadd [#allocation6], %s35
      %s38 = sshll.u32 [#allocation7], 4
      %s39 = int_to_ptr.vmem [resolvable:$true] %s38
      %41 = dma.hbm_to_vmem [thread:$0]  %s2, 128, %s39, [#allocation6]
    $region13: #{tpu_custom_call.1} parent=1 // pred_fallthru
      _
    // Predicated region
    $region14: #{tpu_custom_call.1} parent=1 // pred_check
      _
    $region15: #{tpu_custom_call.1} parent=1 // pred_check_branch
      %43 = sbr.rel (0) target = $region17
    $region16: #{tpu_custom_call.1} parent=1 // pred_region
      _
    $region17: #{tpu_custom_call.1} parent=1 // pred_fallthru
      _
    // Predicated region
    $region18: #{tpu_custom_call.1} parent=1 // pred_check
      _
    $region19: #{tpu_custom_call.1} parent=1 // pred_check_branch
      %45 = sbr.rel (0) target = $region21
    $region20: #{tpu_custom_call.1} parent=1 // pred_region
      %46 = dma.done [#allocation3], 256
    $region21: #{tpu_custom_call.1} parent=1 // pred_fallthru
      _
    // Predicated region
    $region22: #{tpu_custom_call.1} parent=1 // pred_check
      _
    $region23: #{tpu_custom_call.1} parent=1 // pred_check_branch
      %48 = sbr.rel (0) target = $region25
    $region24: #{tpu_custom_call.1} parent=1 // pred_region
      %49 = dma.done [#allocation6], 128
    $region25: #{tpu_custom_call.1} parent=1 // pred_fallthru
      _
    // Predicated region
    $region26: #{tpu_custom_call.1} parent=1 // pred_check
      _
    $region27: #{tpu_custom_call.1} parent=1 // pred_check_branch
      %51 = sbr.rel (0) target = $region29
    $region28: #{tpu_custom_call.1} parent=1 // pred_region
      %52 = dma.done [#allocation6], 128
    $region29: #{tpu_custom_call.1} parent=1 // pred_fallthru
      _
    %v53 = vld [vmem:[#allocation2] sm:$0xff]
    %v54 = vld [vmem:[#allocation2 + $0x8] sm:$0xff]
    %v55 = vld [vmem:[#allocation5] sm:$0xff]
    %v57 = vlaneseq
    %v58 = vshrl.u32 %v57, 7
    %v59 = vsub.s32 0, %v58
    %v60 = vrot.slane %v55, %v59
    %v61 = vlaneseq
    %v62 = vshrl.u32 %v61, 7
    %v63 = vsub.s32 1, %v62
    %v64 = vrot.slane %v55, %v63
    %v65 = vlaneseq
    %v66 = vshrl.u32 %v65, 7
    %v67 = vsub.s32 2, %v66
    %v68 = vrot.slane %v55, %v67
    %v69 = vlaneseq
    %v70 = vshrl.u32 %v69, 7
    %v71 = vsub.s32 3, %v70
    %v72 = vrot.slane %v55, %v71
    %v73 = vlaneseq
    %v74 = vshrl.u32 %v73, 7
    %v75 = vsub.s32 4, %v74
    %v76 = vrot.slane %v55, %v75
    %v77 = vlaneseq
    %v78 = vshrl.u32 %v77, 7
    %v79 = vsub.s32 5, %v78
    %v80 = vrot.slane %v55, %v79
    %v81 = vlaneseq
    %v82 = vshrl.u32 %v81, 7
    %v83 = vsub.s32 6, %v82
    %v84 = vrot.slane %v55, %v83
    %v85 = vlaneseq
    %v86 = vshrl.u32 %v85, 7
    %v87 = vsub.s32 7, %v86
    %v88 = vrot.slane %v55, %v87
    %v89 = vcombine.low %v60, %v64
    %v90 = vcombine.low %v68, %v72
    %v92 = vunpack.c.l.s4 1983009808
    %v93 = vunpack.c.0.s8 %v92
    %v94 = vlaneseq
    %v95 = vshrl.u32 %v94, 7
    %v96 = vsub.s32 %v93, %v95
    %v97 = vrot.slane %v89, %v96
    %v99 = vunpack.c.l.s4 1983009808
    %v100 = vunpack.c.0.s8 %v99
    %v101 = vlaneseq
    %v102 = vshrl.u32 %v101, 7
    %v103 = vsub.s32 %v100, %v102
    %v104 = vrot.slane %v90, %v103
    %v105 = vcombine.low %v97, %v104
    %v106 = vcombine.low %v76, %v80
    %v107 = vcombine.low %v84, %v88
    %v109 = vunpack.c.l.s4 1983009808
    %v110 = vunpack.c.0.s8 %v109
    %v111 = vlaneseq
    %v112 = vshrl.u32 %v111, 7
    %v113 = vsub.s32 %v110, %v112
    %v114 = vrot.slane %v106, %v113
    %v116 = vunpack.c.l.s4 1983009808
    %v117 = vunpack.c.0.s8 %v116
    %v118 = vlaneseq
    %v119 = vshrl.u32 %v118, 7
    %v120 = vsub.s32 %v117, %v119
    %v121 = vrot.slane %v107, %v120
    %v122 = vcombine.low %v114, %v121
    %v125 = vsub.f32 %v53, %v105
    %v126 = vsub.f32 %v54, %v122
    %v127 = vld [vmem:[#allocation7] sm:$0xff]
    %v129 = vlaneseq
    %v130 = vshrl.u32 %v129, 7
    %v131 = vsub.s32 0, %v130
    %v132 = vrot.slane %v127, %v131
    %v133 = vlaneseq
    %v134 = vshrl.u32 %v133, 7
    %v135 = vsub.s32 1, %v134
    %v136 = vrot.slane %v127, %v135
    %v137 = vlaneseq
    %v138 = vshrl.u32 %v137, 7
    %v139 = vsub.s32 2, %v138
    %v140 = vrot.slane %v127, %v139
    %v141 = vlaneseq
    %v142 = vshrl.u32 %v141, 7
    %v143 = vsub.s32 3, %v142
    %v144 = vrot.slane %v127, %v143
    %v145 = vlaneseq
    %v146 = vshrl.u32 %v145, 7
    %v147 = vsub.s32 4, %v146
    %v148 = vrot.slane %v127, %v147
    %v149 = vlaneseq
    %v150 = vshrl.u32 %v149, 7
    %v151 = vsub.s32 5, %v150
    %v152 = vrot.slane %v127, %v151
    %v153 = vlaneseq
    %v154 = vshrl.u32 %v153, 7
    %v155 = vsub.s32 6, %v154
    %v156 = vrot.slane %v127, %v155
    %v157 = vlaneseq
    %v158 = vshrl.u32 %v157, 7
    %v159 = vsub.s32 7, %v158
    %v160 = vrot.slane %v127, %v159
    %v161 = vcombine.low %v132, %v136
    %v162 = vcombine.low %v140, %v144
    %v164 = vunpack.c.l.s4 1983009808
    %v165 = vunpack.c.0.s8 %v164
    %v166 = vlaneseq
    %v167 = vshrl.u32 %v166, 7
    %v168 = vsub.s32 %v165, %v167
    %v169 = vrot.slane %v161, %v168
    %v171 = vunpack.c.l.s4 1983009808
    %v172 = vunpack.c.0.s8 %v171
    %v173 = vlaneseq
    %v174 = vshrl.u32 %v173, 7
    %v175 = vsub.s32 %v172, %v174
    %v176 = vrot.slane %v162, %v175
    %v177 = vcombine.low %v169, %v176
    %v178 = vcombine.low %v148, %v152
    %v179 = vcombine.low %v156, %v160
    %v181 = vunpack.c.l.s4 1983009808
    %v182 = vunpack.c.0.s8 %v181
    %v183 = vlaneseq
    %v184 = vshrl.u32 %v183, 7
    %v185 = vsub.s32 %v182, %v184
    %v186 = vrot.slane %v178, %v185
    %v188 = vunpack.c.l.s4 1983009808
    %v189 = vunpack.c.0.s8 %v188
    %v190 = vlaneseq
    %v191 = vshrl.u32 %v190, 7
    %v192 = vsub.s32 %v189, %v191
    %v193 = vrot.slane %v179, %v192
    %v194 = vcombine.low %v186, %v193
    %v197 = vmul.f32 %v125, %v177
    %v198 = vmul.f32 %v126, %v194
    %v199 = vld [vmem:[%s3] sm:$0xff]
    %v200 = vmul.f32 %v197, %v197
    %v201 = vmul.f32 %v198, %v198
    %v202 = vmul.f32 %v200, 0.5
    %v203 = vmul.f32 %v201, 0.5
    %v205 = vlaneseq
    %v206 = vshrl.u32 %v205, 7
    %v207 = vsub.s32 0, %v206
    %v208 = vrot.slane %v199, %v207
    %v209 = vlaneseq
    %v210 = vshrl.u32 %v209, 7
    %v211 = vsub.s32 1, %v210
    %v212 = vrot.slane %v199, %v211
    %v213 = vlaneseq
    %v214 = vshrl.u32 %v213, 7
    %v215 = vsub.s32 2, %v214
    %v216 = vrot.slane %v199, %v215
    %v217 = vlaneseq
    %v218 = vshrl.u32 %v217, 7
    %v219 = vsub.s32 3, %v218
    %v220 = vrot.slane %v199, %v219
    %v221 = vlaneseq
    %v222 = vshrl.u32 %v221, 7
    %v223 = vsub.s32 4, %v222
    %v224 = vrot.slane %v199, %v223
    %v225 = vlaneseq
    %v226 = vshrl.u32 %v225, 7
    %v227 = vsub.s32 5, %v226
    %v228 = vrot.slane %v199, %v227
    %v229 = vlaneseq
    %v230 = vshrl.u32 %v229, 7
    %v231 = vsub.s32 6, %v230
    %v232 = vrot.slane %v199, %v231
    %v233 = vlaneseq
    %v234 = vshrl.u32 %v233, 7
    %v235 = vsub.s32 7, %v234
    %v236 = vrot.slane %v199, %v235
    %v247 = vcombine.high %v202, %v202
    %v249 = vunpack.c.l.s4 1983009808
    %v250 = vunpack.c.0.s8 %v249
    %v251 = vlaneseq
    %v252 = vshrl.u32 %v251, 7
    %v253 = vsub.s32 %v250, %v252
    %v254 = vrot.slane %v202, %v253
    %v256 = vunpack.c.l.s4 1983009808
    %v257 = vunpack.c.0.s8 %v256
    %v258 = vlaneseq
    %v259 = vshrl.u32 %v258, 7
    %v260 = vsub.s32 %v257, %v259
    %v261 = vrot.slane %v247, %v260
    %v262 = vcombine.high %v254, %v254
    %v263 = vcombine.high %v261, %v261
    %v264 = vcombine.high %v203, %v203
    %v266 = vunpack.c.l.s4 1983009808
    %v267 = vunpack.c.0.s8 %v266
    %v268 = vlaneseq
    %v269 = vshrl.u32 %v268, 7
    %v270 = vsub.s32 %v267, %v269
    %v271 = vrot.slane %v203, %v270
    %v273 = vunpack.c.l.s4 1983009808
    %v274 = vunpack.c.0.s8 %v273
    %v275 = vlaneseq
    %v276 = vshrl.u32 %v275, 7
    %v277 = vsub.s32 %v274, %v276
    %v278 = vrot.slane %v264, %v277
    %v279 = vcombine.high %v271, %v271
    %v280 = vcombine.high %v278, %v278
    %v289 = vsub.f32 %v208, %v254
    %v290 = vsub.f32 %v212, %v262
    %v291 = vsub.f32 %v216, %v261
    %v292 = vsub.f32 %v220, %v263
    %v293 = vsub.f32 %v224, %v271
    %v294 = vsub.f32 %v228, %v279
    %v295 = vsub.f32 %v232, %v278
    %v296 = vsub.f32 %v236, %v280
    %v305 = vcombine.low %v289, %v290
    %v306 = vcombine.low %v291, %v292
    %v308 = vunpack.c.l.s4 1983009808
    %v309 = vunpack.c.0.s8 %v308
    %v310 = vlaneseq
    %v311 = vshrl.u32 %v310, 7
    %v312 = vsub.s32 %v309, %v311
    %v313 = vrot.slane %v305, %v312
    %v315 = vunpack.c.l.s4 1983009808
    %v316 = vunpack.c.0.s8 %v315
    %v317 = vlaneseq
    %v318 = vshrl.u32 %v317, 7
    %v319 = vsub.s32 %v316, %v318
    %v320 = vrot.slane %v306, %v319
    %v321 = vcombine.low %v313, %v320
    %v322 = vcombine.low %v293, %v294
    %v323 = vcombine.low %v295, %v296
    %v325 = vunpack.c.l.s4 1983009808
    %v326 = vunpack.c.0.s8 %v325
    %v327 = vlaneseq
    %v328 = vshrl.u32 %v327, 7
    %v329 = vsub.s32 %v326, %v328
    %v330 = vrot.slane %v322, %v329
    %v332 = vunpack.c.l.s4 1983009808
    %v333 = vunpack.c.0.s8 %v332
    %v334 = vlaneseq
    %v335 = vshrl.u32 %v334, 7
    %v336 = vsub.s32 %v333, %v335
    %v337 = vrot.slane %v323, %v336
    %v338 = vcombine.low %v330, %v337
    %341 = vst [vmem:[#allocation8] sm:$0xff] %v321
    %342 = vst [vmem:[#allocation8 + $0x8] sm:$0xff] %v338
    // Predicated region
    $region30: #{tpu_custom_call.1} parent=1 // pred_check
      _
    $region31: #{tpu_custom_call.1} parent=1 // pred_check_branch
      %344 = sbr.rel (0) target = $region33
    $region32: #{tpu_custom_call.1} parent=1 // pred_region
      %s346 = ssub.s32 256, 256
      %347 = vsyncadd [#allocation4], %s346
      %s349 = sshll.u32 [#allocation8], 4
      %s350 = int_to_ptr.vmem [resolvable:$true] %s349
      %352 = dma.vmem_to_hbm [thread:$0]  %s350, 256, %s4, [#allocation4]
    $region33: #{tpu_custom_call.1} parent=1 // pred_fallthru
      _
    // Predicated region
    $region34: #{tpu_custom_call.1} parent=1 // pred_check
      _
    $region35: #{tpu_custom_call.1} parent=1 // pred_check_branch
      %354 = sbr.rel (0) target = $region37
    $region36: #{tpu_custom_call.1} parent=1 // pred_region
      %355 = dma.done [#allocation4], 256
    $region37: #{tpu_custom_call.1} parent=1 // pred_fallthru
      _
    %356 = vsyncpa [#allocation3], 1
    %357 = vsyncpa [#allocation6], 1
    %358 = vsyncpa [#allocation4], 1

</llo_original>
